<compile_context>
chip_gen: v5e
topology: v5e:2x2
jax: 0.10.0
libtpu: 0.0.40
codegen_flags: <defaults>
</compile_context>

<pallas_src>
import jax
import jax.numpy as jnp
from jax.experimental import pallas as pl
from jax.experimental.pallas import tpu as pltpu

N_BLOCKS = 3
C_IN = 4
C_OUT = 8

LANE = 128
SUBLANE = 8
MAX_TR_CLAMP = 131072          # hard ceiling on spatial lanes per grid step
MIN_SPLIT_HW = 16 * 1024       # only force a 2-way split (megacore) above this


def lambda_forward_kernel(x_ref, wt_ref, b_ref, o_ref):
    """One (batch, spatial-tile) grid step of the folded 1x1-conv sum.

    x_ref : (C_IN, TR//128, 128)  VMEM  - dense lane-major input slabs
    wt_ref: (C_OUT, C_IN)         SMEM  - folded (summed, transposed) weight
    b_ref : (C_OUT,)              SMEM  - folded (summed) bias
    o_ref : (C_OUT, TR//128, 128) VMEM
    """
    # out[co] = sum_ci wt[co, ci] * x[ci] + b[co]
    # Scalars come from SMEM -> hoisted splats; slabs are fully dense vregs.
    # Each output channel is one fused expression -> no big live accumulator.
    for co in range(C_OUT):
        acc = x_ref[0].astype(jnp.float32) * wt_ref[co, 0]
        for ci in range(1, C_IN):
            acc = acc + x_ref[ci].astype(jnp.float32) * wt_ref[co, ci]
        o_ref[co] = (acc + b_ref[co]).astype(o_ref.dtype)


def _round_up(x, m):
    return ((x + m - 1) // m) * m


def _max_tile_lanes(itemsize):
    """Per-generation ceiling on spatial lanes per grid step (VMEM-budget based)."""
    vmem = 64 << 20  # conservative default: v7x has the smallest physical VMEM
    try:
        info = pltpu.get_tpu_info()
        vmem = int(getattr(info, "vmem_capacity_bytes", vmem))
    except Exception:
        pass
    # Double-buffered in+out working set: 2*(C_IN+C_OUT)*itemsize bytes / lane.
    budget = vmem // 4
    lanes = budget // (2 * (C_IN + C_OUT) * itemsize)
    lanes = (lanes // (SUBLANE * LANE)) * (SUBLANE * LANE)
    return int(max(SUBLANE * LANE * 8, min(lanes, MAX_TR_CLAMP)))


def _choose_tiling(hw, max_tr, n_batch):
    """Return (hw_pad, tr): padded spatial extent and lane-tile size.

    Guarantees: tr % 128 == 0, tr divides hw_pad, and either tr == hw_pad
    (full extent) or tr//128 is a multiple of 8 (dense sublanes).
    """
    hw128 = _round_up(hw, LANE)
    steps = max(1, -(-hw128 // max_tr))           # cdiv
    if n_batch == 1 and steps == 1 and hw128 >= MIN_SPLIT_HW:
        steps = 2                                 # keep both v7x TCs busy
    if steps == 1:
        return hw128, hw128                       # single full-extent tile
    tr = _round_up(-(-hw128 // steps), SUBLANE * LANE)
    return tr * steps, tr


def lambda_forward(x_nchw, weights, biases):
    """x_nchw: [N, C_IN, H, W]; weights: [N_BLOCKS, C_IN, C_OUT]; biases: [N_BLOCKS, C_OUT].

    NOTE: weights are expected already transposed from PyTorch's Conv2d
    [C_OUT, C_IN, 1, 1] layout into [C_IN, C_OUT] per block.
    """
    n, c, h, w = x_nchw.shape
    assert c == C_IN
    hw = h * w
    itemsize = jnp.dtype(x_nchw.dtype).itemsize

    max_tr = _max_tile_lanes(itemsize)
    hw_pad, tr = _choose_tiling(hw, max_tr, n)
    rows_total = hw_pad // LANE
    tr_rows = tr // LANE

    # Free, contiguous reshape (no transpose): NCHW -> [N, C_IN, H*W];
    # cheap zero-pad of the flattened spatial axis only when needed.
    x3 = x_nchw.reshape(n, C_IN, hw)
    if hw_pad != hw:
        x3 = jnp.pad(x3, ((0, 0), (0, 0), (0, hw_pad - hw)))
    x4 = x3.reshape(n, C_IN, rows_total, LANE)

    # Fold the parallel blocks (in f32):
    #   sum_k (x @ W_k + b_k) == x @ (sum_k W_k) + sum_k b_k
    wt = jnp.sum(weights.astype(jnp.float32), axis=0).T   # (C_OUT, C_IN)
    b = jnp.sum(biases.astype(jnp.float32), axis=0)        # (C_OUT,)

    grid = (n, rows_total // tr_rows)

    # Explicit VMEM limit covering the double-buffered in+out tiles
    # (raises v5e's 16 MiB scoped default; well under v7x's 64 MiB physical).
    vmem_limit = int(min(2 * (C_IN + C_OUT) * tr * itemsize + (8 << 20), 30 << 20))

    out4 = pl.pallas_call(
        lambda_forward_kernel,
        out_shape=jax.ShapeDtypeStruct((n, C_OUT, rows_total, LANE), x_nchw.dtype),
        grid_spec=pltpu.PrefetchScalarGridSpec(
            num_scalar_prefetch=0,
            grid=grid,
            in_specs=[
                # Batch dim squeezed; dense (rows, 128) slabs per channel.
                pl.BlockSpec((None, C_IN, tr_rows, LANE), lambda i, j: (i, 0, j, 0)),
                # Tiny folded params live in SMEM -> read as scalars in-kernel.
                pl.BlockSpec(memory_space=pltpu.MemorySpace.SMEM),
                pl.BlockSpec(memory_space=pltpu.MemorySpace.SMEM),
            ],
            out_specs=pl.BlockSpec((None, C_OUT, tr_rows, LANE),
                                   lambda i, j: (i, 0, j, 0)),
        ),
        compiler_params=pltpu.CompilerParams(
            dimension_semantics=("parallel", "parallel"),
            vmem_limit_bytes=vmem_limit,
        ),
    )(x4, wt, b)

    out = out4.reshape(n, C_OUT, hw_pad)
    if hw_pad != hw:
        out = out[:, :, :hw]
    return out.reshape(n, C_OUT, h, w)


def lambda_forward_ref(x_nchw, weights, biases):
    """Plain-JAX reference mirroring the PyTorch forward (per-block 1x1 conv, then sum)."""
    n, c, h, w = x_nchw.shape
    x_flat = jnp.transpose(x_nchw, (0, 2, 3, 1)).reshape(-1, c)
    res = [x_flat @ weights[k] + biases[k] for k in range(N_BLOCKS)]
    out = jnp.sum(jnp.stack(res), axis=0)
    return jnp.transpose(out.reshape(n, h, w, C_OUT), (0, 3, 1, 2))


if __name__ == "__main__":
    key = jax.random.PRNGKey(0)
    kx, kw, kb = jax.random.split(key, 3)

    # Small shapes consistent with the module: batch=2, C_in=4, spatial=16.
    x = jax.random.normal(kx, (2, C_IN, 16, 16), dtype=jnp.float32)

    # Deterministic synthetic parameters (shapes from Conv2d(4, 8, 1)).
    weights = jax.random.normal(kw, (N_BLOCKS, C_IN, C_OUT), dtype=jnp.float32) * 0.1
    biases = jax.random.normal(kb, (N_BLOCKS, C_OUT), dtype=jnp.float32) * 0.1

    out = jax.block_until_ready(lambda_forward(x, weights, biases))
    ref = lambda_forward_ref(x, weights, biases)

    assert out.shape == (2, C_OUT, 16, 16)
    # The parameter fold changes f32 summation order; 1e-4 tolerance covers it.
    assert jnp.allclose(out, ref, atol=1e-4, rtol=1e-4)

    print("KERNEL_OK")
</pallas_src>

<mosaic_0001>
module attributes {stable_mosaic.version = 11 : i64} {
  func.func @lambda_forward_kernel(%arg0: i32, %arg1: i32, %arg2: memref<1x4x2x128xf32, #tpu.memory_space<vmem>>, %arg3: memref<8x4xf32, #tpu.memory_space<smem>>, %arg4: memref<8xf32, #tpu.memory_space<smem>>, %arg5: memref<1x8x2x128xf32, #tpu.memory_space<vmem>>) attributes {dimension_semantics = [#tpu.dimension_semantics<parallel>, #tpu.dimension_semantics<parallel>], iteration_bounds = array<i64: 2, 1>, scalar_prefetch = 0 : i64, scratch_operands = 0 : i64, tpu.core_type = #tpu.core_type<tc>, window_params = [{transform_indices = @transform_0, window_bounds = array<i64: 1, 4, 2, 128>}, {transform_indices = @transform_1, window_bounds = array<i64: 8, 4>}, {transform_indices = @transform_2, window_bounds = array<i64: 8>}, {transform_indices = @transform_3, window_bounds = array<i64: 1, 8, 2, 128>}]} {
    %c0 = arith.constant 0 : index
    %c0_0 = arith.constant 0 : index
    %c0_1 = arith.constant 0 : index
    %c0_2 = arith.constant 0 : index
    %0 = vector.load %arg2[%c0, %c0_0, %c0_1, %c0_2] : memref<1x4x2x128xf32, #tpu.memory_space<vmem>>, vector<1x1x2x128xf32>
    %1 = vector.shape_cast %0 : vector<1x1x2x128xf32> to vector<2x128xf32>
    %c0_3 = arith.constant 0 : index
    %c0_4 = arith.constant 0 : index
    %2 = memref.load %arg3[%c0_3, %c0_4] : memref<8x4xf32, #tpu.memory_space<smem>>
    %3 = vector.broadcast %2 : f32 to vector<2x128xf32>
    %4 = arith.mulf %1, %3 : vector<2x128xf32>
    %c0_5 = arith.constant 0 : index
    %c1 = arith.constant 1 : index
    %c0_6 = arith.constant 0 : index
    %c0_7 = arith.constant 0 : index
    %5 = vector.load %arg2[%c0_5, %c1, %c0_6, %c0_7] : memref<1x4x2x128xf32, #tpu.memory_space<vmem>>, vector<1x1x2x128xf32>
    %6 = vector.shape_cast %5 : vector<1x1x2x128xf32> to vector<2x128xf32>
    %c0_8 = arith.constant 0 : index
    %c1_9 = arith.constant 1 : index
    %7 = memref.load %arg3[%c0_8, %c1_9] : memref<8x4xf32, #tpu.memory_space<smem>>
    %8 = vector.broadcast %7 : f32 to vector<2x128xf32>
    %9 = arith.mulf %6, %8 : vector<2x128xf32>
    %10 = arith.addf %4, %9 : vector<2x128xf32>
    %c0_10 = arith.constant 0 : index
    %c2 = arith.constant 2 : index
    %c0_11 = arith.constant 0 : index
    %c0_12 = arith.constant 0 : index
    %11 = vector.load %arg2[%c0_10, %c2, %c0_11, %c0_12] : memref<1x4x2x128xf32, #tpu.memory_space<vmem>>, vector<1x1x2x128xf32>
    %12 = vector.shape_cast %11 : vector<1x1x2x128xf32> to vector<2x128xf32>
    %c0_13 = arith.constant 0 : index
    %c2_14 = arith.constant 2 : index
    %13 = memref.load %arg3[%c0_13, %c2_14] : memref<8x4xf32, #tpu.memory_space<smem>>
    %14 = vector.broadcast %13 : f32 to vector<2x128xf32>
    %15 = arith.mulf %12, %14 : vector<2x128xf32>
    %16 = arith.addf %10, %15 : vector<2x128xf32>
    %c0_15 = arith.constant 0 : index
    %c3 = arith.constant 3 : index
    %c0_16 = arith.constant 0 : index
    %c0_17 = arith.constant 0 : index
    %17 = vector.load %arg2[%c0_15, %c3, %c0_16, %c0_17] : memref<1x4x2x128xf32, #tpu.memory_space<vmem>>, vector<1x1x2x128xf32>
    %18 = vector.shape_cast %17 : vector<1x1x2x128xf32> to vector<2x128xf32>
    %c0_18 = arith.constant 0 : index
    %c3_19 = arith.constant 3 : index
    %19 = memref.load %arg3[%c0_18, %c3_19] : memref<8x4xf32, #tpu.memory_space<smem>>
    %20 = vector.broadcast %19 : f32 to vector<2x128xf32>
    %21 = arith.mulf %18, %20 : vector<2x128xf32>
    %22 = arith.addf %16, %21 : vector<2x128xf32>
    %c0_20 = arith.constant 0 : index
    %23 = memref.load %arg4[%c0_20] : memref<8xf32, #tpu.memory_space<smem>>
    %24 = vector.broadcast %23 : f32 to vector<2x128xf32>
    %25 = arith.addf %22, %24 : vector<2x128xf32>
    %c0_21 = arith.constant 0 : index
    %c0_22 = arith.constant 0 : index
    %c0_23 = arith.constant 0 : index
    %c0_24 = arith.constant 0 : index
    %26 = vector.load %arg5[%c0_21, %c0_22, %c0_23, %c0_24] : memref<1x8x2x128xf32, #tpu.memory_space<vmem>>, vector<1x1x2x128xf32>
    %27 = vector.shape_cast %26 : vector<1x1x2x128xf32> to vector<2x128xf32>
    %28 = vector.shape_cast %25 : vector<2x128xf32> to vector<1x1x2x128xf32>
    tpu.vector_store %arg5[%c0_21, %c0_22, %c0_23, %c0_24], %28 {strides = array<i32>} : memref<1x8x2x128xf32, #tpu.memory_space<vmem>>, vector<1x1x2x128xf32>,
    %c0_25 = arith.constant 0 : index
    %c0_26 = arith.constant 0 : index
    %c0_27 = arith.constant 0 : index
    %c0_28 = arith.constant 0 : index
    %29 = vector.load %arg2[%c0_25, %c0_26, %c0_27, %c0_28] : memref<1x4x2x128xf32, #tpu.memory_space<vmem>>, vector<1x1x2x128xf32>
    %30 = vector.shape_cast %29 : vector<1x1x2x128xf32> to vector<2x128xf32>
    %c1_29 = arith.constant 1 : index
    %c0_30 = arith.constant 0 : index
    %31 = memref.load %arg3[%c1_29, %c0_30] : memref<8x4xf32, #tpu.memory_space<smem>>
    %32 = vector.broadcast %31 : f32 to vector<2x128xf32>
    %33 = arith.mulf %30, %32 : vector<2x128xf32>
    %c0_31 = arith.constant 0 : index
    %c1_32 = arith.constant 1 : index
    %c0_33 = arith.constant 0 : index
    %c0_34 = arith.constant 0 : index
    %34 = vector.load %arg2[%c0_31, %c1_32, %c0_33, %c0_34] : memref<1x4x2x128xf32, #tpu.memory_space<vmem>>, vector<1x1x2x128xf32>
    %35 = vector.shape_cast %34 : vector<1x1x2x128xf32> to vector<2x128xf32>
    %c1_35 = arith.constant 1 : index
    %c1_36 = arith.constant 1 : index
    %36 = memref.load %arg3[%c1_35, %c1_36] : memref<8x4xf32, #tpu.memory_space<smem>>
    %37 = vector.broadcast %36 : f32 to vector<2x128xf32>
    %38 = arith.mulf %35, %37 : vector<2x128xf32>
    %39 = arith.addf %33, %38 : vector<2x128xf32>
    %c0_37 = arith.constant 0 : index
    %c2_38 = arith.constant 2 : index
    %c0_39 = arith.constant 0 : index
    %c0_40 = arith.constant 0 : index
    %40 = vector.load %arg2[%c0_37, %c2_38, %c0_39, %c0_40] : memref<1x4x2x128xf32, #tpu.memory_space<vmem>>, vector<1x1x2x128xf32>
    %41 = vector.shape_cast %40 : vector<1x1x2x128xf32> to vector<2x128xf32>
    %c1_41 = arith.constant 1 : index
    %c2_42 = arith.constant 2 : index
    %42 = memref.load %arg3[%c1_41, %c2_42] : memref<8x4xf32, #tpu.memory_space<smem>>
    %43 = vector.broadcast %42 : f32 to vector<2x128xf32>
    %44 = arith.mulf %41, %43 : vector<2x128xf32>
    %45 = arith.addf %39, %44 : vector<2x128xf32>
    %c0_43 = arith.constant 0 : index
    %c3_44 = arith.constant 3 : index
    %c0_45 = arith.constant 0 : index
    %c0_46 = arith.constant 0 : index
    %46 = vector.load %arg2[%c0_43, %c3_44, %c0_45, %c0_46] : memref<1x4x2x128xf32, #tpu.memory_space<vmem>>, vector<1x1x2x128xf32>
    %47 = vector.shape_cast %46 : vector<1x1x2x128xf32> to vector<2x128xf32>
    %c1_47 = arith.constant 1 : index
    %c3_48 = arith.constant 3 : index
    %48 = memref.load %arg3[%c1_47, %c3_48] : memref<8x4xf32, #tpu.memory_space<smem>>
    %49 = vector.broadcast %48 : f32 to vector<2x128xf32>
    %50 = arith.mulf %47, %49 : vector<2x128xf32>
    %51 = arith.addf %45, %50 : vector<2x128xf32>
    %c1_49 = arith.constant 1 : index
    %52 = memref.load %arg4[%c1_49] : memref<8xf32, #tpu.memory_space<smem>>
    %53 = vector.broadcast %52 : f32 to vector<2x128xf32>
    %54 = arith.addf %51, %53 : vector<2x128xf32>
    %c0_50 = arith.constant 0 : index
    %c1_51 = arith.constant 1 : index
    %c0_52 = arith.constant 0 : index
    %c0_53 = arith.constant 0 : index
    %55 = vector.load %arg5[%c0_50, %c1_51, %c0_52, %c0_53] : memref<1x8x2x128xf32, #tpu.memory_space<vmem>>, vector<1x1x2x128xf32>
    %56 = vector.shape_cast %55 : vector<1x1x2x128xf32> to vector<2x128xf32>
    %57 = vector.shape_cast %54 : vector<2x128xf32> to vector<1x1x2x128xf32>
    tpu.vector_store %arg5[%c0_50, %c1_51, %c0_52, %c0_53], %57 {strides = array<i32>} : memref<1x8x2x128xf32, #tpu.memory_space<vmem>>, vector<1x1x2x128xf32>,
    %c0_54 = arith.constant 0 : index
    %c0_55 = arith.constant 0 : index
    %c0_56 = arith.constant 0 : index
    %c0_57 = arith.constant 0 : index
    %58 = vector.load %arg2[%c0_54, %c0_55, %c0_56, %c0_57] : memref<1x4x2x128xf32, #tpu.memory_space<vmem>>, vector<1x1x2x128xf32>
    %59 = vector.shape_cast %58 : vector<1x1x2x128xf32> to vector<2x128xf32>
    %c2_58 = arith.constant 2 : index
    %c0_59 = arith.constant 0 : index
    %60 = memref.load %arg3[%c2_58, %c0_59] : memref<8x4xf32, #tpu.memory_space<smem>>
    %61 = vector.broadcast %60 : f32 to vector<2x128xf32>
    %62 = arith.mulf %59, %61 : vector<2x128xf32>
    %c0_60 = arith.constant 0 : index
    %c1_61 = arith.constant 1 : index
    %c0_62 = arith.constant 0 : index
    %c0_63 = arith.constant 0 : index
    %63 = vector.load %arg2[%c0_60, %c1_61, %c0_62, %c0_63] : memref<1x4x2x128xf32, #tpu.memory_space<vmem>>, vector<1x1x2x128xf32>
    %64 = vector.shape_cast %63 : vector<1x1x2x128xf32> to vector<2x128xf32>
    %c2_64 = arith.constant 2 : index
    %c1_65 = arith.constant 1 : index
    %65 = memref.load %arg3[%c2_64, %c1_65] : memref<8x4xf32, #tpu.memory_space<smem>>
    %66 = vector.broadcast %65 : f32 to vector<2x128xf32>
    %67 = arith.mulf %64, %66 : vector<2x128xf32>
    %68 = arith.addf %62, %67 : vector<2x128xf32>
    %c0_66 = arith.constant 0 : index
    %c2_67 = arith.constant 2 : index
    %c0_68 = arith.constant 0 : index
    %c0_69 = arith.constant 0 : index
    %69 = vector.load %arg2[%c0_66, %c2_67, %c0_68, %c0_69] : memref<1x4x2x128xf32, #tpu.memory_space<vmem>>, vector<1x1x2x128xf32>
    %70 = vector.shape_cast %69 : vector<1x1x2x128xf32> to vector<2x128xf32>
    %c2_70 = arith.constant 2 : index
    %c2_71 = arith.constant 2 : index
    %71 = memref.load %arg3[%c2_70, %c2_71] : memref<8x4xf32, #tpu.memory_space<smem>>
    %72 = vector.broadcast %71 : f32 to vector<2x128xf32>
    %73 = arith.mulf %70, %72 : vector<2x128xf32>
    %74 = arith.addf %68, %73 : vector<2x128xf32>
    %c0_72 = arith.constant 0 : index
    %c3_73 = arith.constant 3 : index
    %c0_74 = arith.constant 0 : index
    %c0_75 = arith.constant 0 : index
    %75 = vector.load %arg2[%c0_72, %c3_73, %c0_74, %c0_75] : memref<1x4x2x128xf32, #tpu.memory_space<vmem>>, vector<1x1x2x128xf32>
    %76 = vector.shape_cast %75 : vector<1x1x2x128xf32> to vector<2x128xf32>
    %c2_76 = arith.constant 2 : index
    %c3_77 = arith.constant 3 : index
    %77 = memref.load %arg3[%c2_76, %c3_77] : memref<8x4xf32, #tpu.memory_space<smem>>
    %78 = vector.broadcast %77 : f32 to vector<2x128xf32>
    %79 = arith.mulf %76, %78 : vector<2x128xf32>
    %80 = arith.addf %74, %79 : vector<2x128xf32>
    %c2_78 = arith.constant 2 : index
    %81 = memref.load %arg4[%c2_78] : memref<8xf32, #tpu.memory_space<smem>>
    %82 = vector.broadcast %81 : f32 to vector<2x128xf32>
    %83 = arith.addf %80, %82 : vector<2x128xf32>
    %c0_79 = arith.constant 0 : index
    %c2_80 = arith.constant 2 : index
    %c0_81 = arith.constant 0 : index
    %c0_82 = arith.constant 0 : index
    %84 = vector.load %arg5[%c0_79, %c2_80, %c0_81, %c0_82] : memref<1x8x2x128xf32, #tpu.memory_space<vmem>>, vector<1x1x2x128xf32>
    %85 = vector.shape_cast %84 : vector<1x1x2x128xf32> to vector<2x128xf32>
    %86 = vector.shape_cast %83 : vector<2x128xf32> to vector<1x1x2x128xf32>
    tpu.vector_store %arg5[%c0_79, %c2_80, %c0_81, %c0_82], %86 {strides = array<i32>} : memref<1x8x2x128xf32, #tpu.memory_space<vmem>>, vector<1x1x2x128xf32>,
    %c0_83 = arith.constant 0 : index
    %c0_84 = arith.constant 0 : index
    %c0_85 = arith.constant 0 : index
    %c0_86 = arith.constant 0 : index
    %87 = vector.load %arg2[%c0_83, %c0_84, %c0_85, %c0_86] : memref<1x4x2x128xf32, #tpu.memory_space<vmem>>, vector<1x1x2x128xf32>
    %88 = vector.shape_cast %87 : vector<1x1x2x128xf32> to vector<2x128xf32>
    %c3_87 = arith.constant 3 : index
    %c0_88 = arith.constant 0 : index
    %89 = memref.load %arg3[%c3_87, %c0_88] : memref<8x4xf32, #tpu.memory_space<smem>>
    %90 = vector.broadcast %89 : f32 to vector<2x128xf32>
    %91 = arith.mulf %88, %90 : vector<2x128xf32>
    %c0_89 = arith.constant 0 : index
    %c1_90 = arith.constant 1 : index
    %c0_91 = arith.constant 0 : index
    %c0_92 = arith.constant 0 : index
    %92 = vector.load %arg2[%c0_89, %c1_90, %c0_91, %c0_92] : memref<1x4x2x128xf32, #tpu.memory_space<vmem>>, vector<1x1x2x128xf32>
    %93 = vector.shape_cast %92 : vector<1x1x2x128xf32> to vector<2x128xf32>
    %c3_93 = arith.constant 3 : index
    %c1_94 = arith.constant 1 : index
    %94 = memref.load %arg3[%c3_93, %c1_94] : memref<8x4xf32, #tpu.memory_space<smem>>
    %95 = vector.broadcast %94 : f32 to vector<2x128xf32>
    %96 = arith.mulf %93, %95 : vector<2x128xf32>
    %97 = arith.addf %91, %96 : vector<2x128xf32>
    %c0_95 = arith.constant 0 : index
    %c2_96 = arith.constant 2 : index
    %c0_97 = arith.constant 0 : index
    %c0_98 = arith.constant 0 : index
    %98 = vector.load %arg2[%c0_95, %c2_96, %c0_97, %c0_98] : memref<1x4x2x128xf32, #tpu.memory_space<vmem>>, vector<1x1x2x128xf32>
    %99 = vector.shape_cast %98 : vector<1x1x2x128xf32> to vector<2x128xf32>
    %c3_99 = arith.constant 3 : index
    %c2_100 = arith.constant 2 : index
    %100 = memref.load %arg3[%c3_99, %c2_100] : memref<8x4xf32, #tpu.memory_space<smem>>
    %101 = vector.broadcast %100 : f32 to vector<2x128xf32>
    %102 = arith.mulf %99, %101 : vector<2x128xf32>
    %103 = arith.addf %97, %102 : vector<2x128xf32>
    %c0_101 = arith.constant 0 : index
    %c3_102 = arith.constant 3 : index
    %c0_103 = arith.constant 0 : index
    %c0_104 = arith.constant 0 : index
    %104 = vector.load %arg2[%c0_101, %c3_102, %c0_103, %c0_104] : memref<1x4x2x128xf32, #tpu.memory_space<vmem>>, vector<1x1x2x128xf32>
    %105 = vector.shape_cast %104 : vector<1x1x2x128xf32> to vector<2x128xf32>
    %c3_105 = arith.constant 3 : index
    %c3_106 = arith.constant 3 : index
    %106 = memref.load %arg3[%c3_105, %c3_106] : memref<8x4xf32, #tpu.memory_space<smem>>
    %107 = vector.broadcast %106 : f32 to vector<2x128xf32>
    %108 = arith.mulf %105, %107 : vector<2x128xf32>
    %109 = arith.addf %103, %108 : vector<2x128xf32>
    %c3_107 = arith.constant 3 : index
    %110 = memref.load %arg4[%c3_107] : memref<8xf32, #tpu.memory_space<smem>>
    %111 = vector.broadcast %110 : f32 to vector<2x128xf32>
    %112 = arith.addf %109, %111 : vector<2x128xf32>
    %c0_108 = arith.constant 0 : index
    %c3_109 = arith.constant 3 : index
    %c0_110 = arith.constant 0 : index
    %c0_111 = arith.constant 0 : index
    %113 = vector.load %arg5[%c0_108, %c3_109, %c0_110, %c0_111] : memref<1x8x2x128xf32, #tpu.memory_space<vmem>>, vector<1x1x2x128xf32>
    %114 = vector.shape_cast %113 : vector<1x1x2x128xf32> to vector<2x128xf32>
    %115 = vector.shape_cast %112 : vector<2x128xf32> to vector<1x1x2x128xf32>
    tpu.vector_store %arg5[%c0_108, %c3_109, %c0_110, %c0_111], %115 {strides = array<i32>} : memref<1x8x2x128xf32, #tpu.memory_space<vmem>>, vector<1x1x2x128xf32>,
    %c0_112 = arith.constant 0 : index
    %c0_113 = arith.constant 0 : index
    %c0_114 = arith.constant 0 : index
    %c0_115 = arith.constant 0 : index
    %116 = vector.load %arg2[%c0_112, %c0_113, %c0_114, %c0_115] : memref<1x4x2x128xf32, #tpu.memory_space<vmem>>, vector<1x1x2x128xf32>
    %117 = vector.shape_cast %116 : vector<1x1x2x128xf32> to vector<2x128xf32>
    %c4 = arith.constant 4 : index
    %c0_116 = arith.constant 0 : index
    %118 = memref.load %arg3[%c4, %c0_116] : memref<8x4xf32, #tpu.memory_space<smem>>
    %119 = vector.broadcast %118 : f32 to vector<2x128xf32>
    %120 = arith.mulf %117, %119 : vector<2x128xf32>
    %c0_117 = arith.constant 0 : index
    %c1_118 = arith.constant 1 : index
    %c0_119 = arith.constant 0 : index
    %c0_120 = arith.constant 0 : index
    %121 = vector.load %arg2[%c0_117, %c1_118, %c0_119, %c0_120] : memref<1x4x2x128xf32, #tpu.memory_space<vmem>>, vector<1x1x2x128xf32>
    %122 = vector.shape_cast %121 : vector<1x1x2x128xf32> to vector<2x128xf32>
    %c4_121 = arith.constant 4 : index
    %c1_122 = arith.constant 1 : index
    %123 = memref.load %arg3[%c4_121, %c1_122] : memref<8x4xf32, #tpu.memory_space<smem>>
    %124 = vector.broadcast %123 : f32 to vector<2x128xf32>
    %125 = arith.mulf %122, %124 : vector<2x128xf32>
    %126 = arith.addf %120, %125 : vector<2x128xf32>
    %c0_123 = arith.constant 0 : index
    %c2_124 = arith.constant 2 : index
    %c0_125 = arith.constant 0 : index
    %c0_126 = arith.constant 0 : index
    %127 = vector.load %arg2[%c0_123, %c2_124, %c0_125, %c0_126] : memref<1x4x2x128xf32, #tpu.memory_space<vmem>>, vector<1x1x2x128xf32>
    %128 = vector.shape_cast %127 : vector<1x1x2x128xf32> to vector<2x128xf32>
    %c4_127 = arith.constant 4 : index
    %c2_128 = arith.constant 2 : index
    %129 = memref.load %arg3[%c4_127, %c2_128] : memref<8x4xf32, #tpu.memory_space<smem>>
    %130 = vector.broadcast %129 : f32 to vector<2x128xf32>
    %131 = arith.mulf %128, %130 : vector<2x128xf32>
    %132 = arith.addf %126, %131 : vector<2x128xf32>
    %c0_129 = arith.constant 0 : index
    %c3_130 = arith.constant 3 : index
    %c0_131 = arith.constant 0 : index
    %c0_132 = arith.constant 0 : index
    %133 = vector.load %arg2[%c0_129, %c3_130, %c0_131, %c0_132] : memref<1x4x2x128xf32, #tpu.memory_space<vmem>>, vector<1x1x2x128xf32>
    %134 = vector.shape_cast %133 : vector<1x1x2x128xf32> to vector<2x128xf32>
    %c4_133 = arith.constant 4 : index
    %c3_134 = arith.constant 3 : index
    %135 = memref.load %arg3[%c4_133, %c3_134] : memref<8x4xf32, #tpu.memory_space<smem>>
    %136 = vector.broadcast %135 : f32 to vector<2x128xf32>
    %137 = arith.mulf %134, %136 : vector<2x128xf32>
    %138 = arith.addf %132, %137 : vector<2x128xf32>
    %c4_135 = arith.constant 4 : index
    %139 = memref.load %arg4[%c4_135] : memref<8xf32, #tpu.memory_space<smem>>
    %140 = vector.broadcast %139 : f32 to vector<2x128xf32>
    %141 = arith.addf %138, %140 : vector<2x128xf32>
    %c0_136 = arith.constant 0 : index
    %c4_137 = arith.constant 4 : index
    %c0_138 = arith.constant 0 : index
    %c0_139 = arith.constant 0 : index
    %142 = vector.load %arg5[%c0_136, %c4_137, %c0_138, %c0_139] : memref<1x8x2x128xf32, #tpu.memory_space<vmem>>, vector<1x1x2x128xf32>
    %143 = vector.shape_cast %142 : vector<1x1x2x128xf32> to vector<2x128xf32>
    %144 = vector.shape_cast %141 : vector<2x128xf32> to vector<1x1x2x128xf32>
    tpu.vector_store %arg5[%c0_136, %c4_137, %c0_138, %c0_139], %144 {strides = array<i32>} : memref<1x8x2x128xf32, #tpu.memory_space<vmem>>, vector<1x1x2x128xf32>,
    %c0_140 = arith.constant 0 : index
    %c0_141 = arith.constant 0 : index
    %c0_142 = arith.constant 0 : index
    %c0_143 = arith.constant 0 : index
    %145 = vector.load %arg2[%c0_140, %c0_141, %c0_142, %c0_143] : memref<1x4x2x128xf32, #tpu.memory_space<vmem>>, vector<1x1x2x128xf32>
    %146 = vector.shape_cast %145 : vector<1x1x2x128xf32> to vector<2x128xf32>
    %c5 = arith.constant 5 : index
    %c0_144 = arith.constant 0 : index
    %147 = memref.load %arg3[%c5, %c0_144] : memref<8x4xf32, #tpu.memory_space<smem>>
    %148 = vector.broadcast %147 : f32 to vector<2x128xf32>
    %149 = arith.mulf %146, %148 : vector<2x128xf32>
    %c0_145 = arith.constant 0 : index
    %c1_146 = arith.constant 1 : index
    %c0_147 = arith.constant 0 : index
    %c0_148 = arith.constant 0 : index
    %150 = vector.load %arg2[%c0_145, %c1_146, %c0_147, %c0_148] : memref<1x4x2x128xf32, #tpu.memory_space<vmem>>, vector<1x1x2x128xf32>
    %151 = vector.shape_cast %150 : vector<1x1x2x128xf32> to vector<2x128xf32>
    %c5_149 = arith.constant 5 : index
    %c1_150 = arith.constant 1 : index
    %152 = memref.load %arg3[%c5_149, %c1_150] : memref<8x4xf32, #tpu.memory_space<smem>>
    %153 = vector.broadcast %152 : f32 to vector<2x128xf32>
    %154 = arith.mulf %151, %153 : vector<2x128xf32>
    %155 = arith.addf %149, %154 : vector<2x128xf32>
    %c0_151 = arith.constant 0 : index
    %c2_152 = arith.constant 2 : index
    %c0_153 = arith.constant 0 : index
    %c0_154 = arith.constant 0 : index
    %156 = vector.load %arg2[%c0_151, %c2_152, %c0_153, %c0_154] : memref<1x4x2x128xf32, #tpu.memory_space<vmem>>, vector<1x1x2x128xf32>
    %157 = vector.shape_cast %156 : vector<1x1x2x128xf32> to vector<2x128xf32>
    %c5_155 = arith.constant 5 : index
    %c2_156 = arith.constant 2 : index
    %158 = memref.load %arg3[%c5_155, %c2_156] : memref<8x4xf32, #tpu.memory_space<smem>>
    %159 = vector.broadcast %158 : f32 to vector<2x128xf32>
    %160 = arith.mulf %157, %159 : vector<2x128xf32>
    %161 = arith.addf %155, %160 : vector<2x128xf32>
    %c0_157 = arith.constant 0 : index
    %c3_158 = arith.constant 3 : index
    %c0_159 = arith.constant 0 : index
    %c0_160 = arith.constant 0 : index
    %162 = vector.load %arg2[%c0_157, %c3_158, %c0_159, %c0_160] : memref<1x4x2x128xf32, #tpu.memory_space<vmem>>, vector<1x1x2x128xf32>
    %163 = vector.shape_cast %162 : vector<1x1x2x128xf32> to vector<2x128xf32>
    %c5_161 = arith.constant 5 : index
    %c3_162 = arith.constant 3 : index
    %164 = memref.load %arg3[%c5_161, %c3_162] : memref<8x4xf32, #tpu.memory_space<smem>>
    %165 = vector.broadcast %164 : f32 to vector<2x128xf32>
    %166 = arith.mulf %163, %165 : vector<2x128xf32>
    %167 = arith.addf %161, %166 : vector<2x128xf32>
    %c5_163 = arith.constant 5 : index
    %168 = memref.load %arg4[%c5_163] : memref<8xf32, #tpu.memory_space<smem>>
    %169 = vector.broadcast %168 : f32 to vector<2x128xf32>
    %170 = arith.addf %167, %169 : vector<2x128xf32>
    %c0_164 = arith.constant 0 : index
    %c5_165 = arith.constant 5 : index
    %c0_166 = arith.constant 0 : index
    %c0_167 = arith.constant 0 : index
    %171 = vector.load %arg5[%c0_164, %c5_165, %c0_166, %c0_167] : memref<1x8x2x128xf32, #tpu.memory_space<vmem>>, vector<1x1x2x128xf32>
    %172 = vector.shape_cast %171 : vector<1x1x2x128xf32> to vector<2x128xf32>
    %173 = vector.shape_cast %170 : vector<2x128xf32> to vector<1x1x2x128xf32>
    tpu.vector_store %arg5[%c0_164, %c5_165, %c0_166, %c0_167], %173 {strides = array<i32>} : memref<1x8x2x128xf32, #tpu.memory_space<vmem>>, vector<1x1x2x128xf32>,
    %c0_168 = arith.constant 0 : index
    %c0_169 = arith.constant 0 : index
    %c0_170 = arith.constant 0 : index
    %c0_171 = arith.constant 0 : index
    %174 = vector.load %arg2[%c0_168, %c0_169, %c0_170, %c0_171] : memref<1x4x2x128xf32, #tpu.memory_space<vmem>>, vector<1x1x2x128xf32>
    %175 = vector.shape_cast %174 : vector<1x1x2x128xf32> to vector<2x128xf32>
    %c6 = arith.constant 6 : index
    %c0_172 = arith.constant 0 : index
    %176 = memref.load %arg3[%c6, %c0_172] : memref<8x4xf32, #tpu.memory_space<smem>>
    %177 = vector.broadcast %176 : f32 to vector<2x128xf32>
    %178 = arith.mulf %175, %177 : vector<2x128xf32>
    %c0_173 = arith.constant 0 : index
    %c1_174 = arith.constant 1 : index
    %c0_175 = arith.constant 0 : index
    %c0_176 = arith.constant 0 : index
    %179 = vector.load %arg2[%c0_173, %c1_174, %c0_175, %c0_176] : memref<1x4x2x128xf32, #tpu.memory_space<vmem>>, vector<1x1x2x128xf32>
    %180 = vector.shape_cast %179 : vector<1x1x2x128xf32> to vector<2x128xf32>
    %c6_177 = arith.constant 6 : index
    %c1_178 = arith.constant 1 : index
    %181 = memref.load %arg3[%c6_177, %c1_178] : memref<8x4xf32, #tpu.memory_space<smem>>
    %182 = vector.broadcast %181 : f32 to vector<2x128xf32>
    %183 = arith.mulf %180, %182 : vector<2x128xf32>
    %184 = arith.addf %178, %183 : vector<2x128xf32>
    %c0_179 = arith.constant 0 : index
    %c2_180 = arith.constant 2 : index
    %c0_181 = arith.constant 0 : index
    %c0_182 = arith.constant 0 : index
    %185 = vector.load %arg2[%c0_179, %c2_180, %c0_181, %c0_182] : memref<1x4x2x128xf32, #tpu.memory_space<vmem>>, vector<1x1x2x128xf32>
    %186 = vector.shape_cast %185 : vector<1x1x2x128xf32> to vector<2x128xf32>
    %c6_183 = arith.constant 6 : index
    %c2_184 = arith.constant 2 : index
    %187 = memref.load %arg3[%c6_183, %c2_184] : memref<8x4xf32, #tpu.memory_space<smem>>
    %188 = vector.broadcast %187 : f32 to vector<2x128xf32>
    %189 = arith.mulf %186, %188 : vector<2x128xf32>
    %190 = arith.addf %184, %189 : vector<2x128xf32>
    %c0_185 = arith.constant 0 : index
    %c3_186 = arith.constant 3 : index
    %c0_187 = arith.constant 0 : index
    %c0_188 = arith.constant 0 : index
    %191 = vector.load %arg2[%c0_185, %c3_186, %c0_187, %c0_188] : memref<1x4x2x128xf32, #tpu.memory_space<vmem>>, vector<1x1x2x128xf32>
    %192 = vector.shape_cast %191 : vector<1x1x2x128xf32> to vector<2x128xf32>
    %c6_189 = arith.constant 6 : index
    %c3_190 = arith.constant 3 : index
    %193 = memref.load %arg3[%c6_189, %c3_190] : memref<8x4xf32, #tpu.memory_space<smem>>
    %194 = vector.broadcast %193 : f32 to vector<2x128xf32>
    %195 = arith.mulf %192, %194 : vector<2x128xf32>
    %196 = arith.addf %190, %195 : vector<2x128xf32>
    %c6_191 = arith.constant 6 : index
    %197 = memref.load %arg4[%c6_191] : memref<8xf32, #tpu.memory_space<smem>>
    %198 = vector.broadcast %197 : f32 to vector<2x128xf32>
    %199 = arith.addf %196, %198 : vector<2x128xf32>
    %c0_192 = arith.constant 0 : index
    %c6_193 = arith.constant 6 : index
    %c0_194 = arith.constant 0 : index
    %c0_195 = arith.constant 0 : index
    %200 = vector.load %arg5[%c0_192, %c6_193, %c0_194, %c0_195] : memref<1x8x2x128xf32, #tpu.memory_space<vmem>>, vector<1x1x2x128xf32>
    %201 = vector.shape_cast %200 : vector<1x1x2x128xf32> to vector<2x128xf32>
    %202 = vector.shape_cast %199 : vector<2x128xf32> to vector<1x1x2x128xf32>
    tpu.vector_store %arg5[%c0_192, %c6_193, %c0_194, %c0_195], %202 {strides = array<i32>} : memref<1x8x2x128xf32, #tpu.memory_space<vmem>>, vector<1x1x2x128xf32>,
    %c0_196 = arith.constant 0 : index
    %c0_197 = arith.constant 0 : index
    %c0_198 = arith.constant 0 : index
    %c0_199 = arith.constant 0 : index
    %203 = vector.load %arg2[%c0_196, %c0_197, %c0_198, %c0_199] : memref<1x4x2x128xf32, #tpu.memory_space<vmem>>, vector<1x1x2x128xf32>
    %204 = vector.shape_cast %203 : vector<1x1x2x128xf32> to vector<2x128xf32>
    %c7 = arith.constant 7 : index
    %c0_200 = arith.constant 0 : index
    %205 = memref.load %arg3[%c7, %c0_200] : memref<8x4xf32, #tpu.memory_space<smem>>
    %206 = vector.broadcast %205 : f32 to vector<2x128xf32>
    %207 = arith.mulf %204, %206 : vector<2x128xf32>
    %c0_201 = arith.constant 0 : index
    %c1_202 = arith.constant 1 : index
    %c0_203 = arith.constant 0 : index
    %c0_204 = arith.constant 0 : index
    %208 = vector.load %arg2[%c0_201, %c1_202, %c0_203, %c0_204] : memref<1x4x2x128xf32, #tpu.memory_space<vmem>>, vector<1x1x2x128xf32>
    %209 = vector.shape_cast %208 : vector<1x1x2x128xf32> to vector<2x128xf32>
    %c7_205 = arith.constant 7 : index
    %c1_206 = arith.constant 1 : index
    %210 = memref.load %arg3[%c7_205, %c1_206] : memref<8x4xf32, #tpu.memory_space<smem>>
    %211 = vector.broadcast %210 : f32 to vector<2x128xf32>
    %212 = arith.mulf %209, %211 : vector<2x128xf32>
    %213 = arith.addf %207, %212 : vector<2x128xf32>
    %c0_207 = arith.constant 0 : index
    %c2_208 = arith.constant 2 : index
    %c0_209 = arith.constant 0 : index
    %c0_210 = arith.constant 0 : index
    %214 = vector.load %arg2[%c0_207, %c2_208, %c0_209, %c0_210] : memref<1x4x2x128xf32, #tpu.memory_space<vmem>>, vector<1x1x2x128xf32>
    %215 = vector.shape_cast %214 : vector<1x1x2x128xf32> to vector<2x128xf32>
    %c7_211 = arith.constant 7 : index
    %c2_212 = arith.constant 2 : index
    %216 = memref.load %arg3[%c7_211, %c2_212] : memref<8x4xf32, #tpu.memory_space<smem>>
    %217 = vector.broadcast %216 : f32 to vector<2x128xf32>
    %218 = arith.mulf %215, %217 : vector<2x128xf32>
    %219 = arith.addf %213, %218 : vector<2x128xf32>
    %c0_213 = arith.constant 0 : index
    %c3_214 = arith.constant 3 : index
    %c0_215 = arith.constant 0 : index
    %c0_216 = arith.constant 0 : index
    %220 = vector.load %arg2[%c0_213, %c3_214, %c0_215, %c0_216] : memref<1x4x2x128xf32, #tpu.memory_space<vmem>>, vector<1x1x2x128xf32>
    %221 = vector.shape_cast %220 : vector<1x1x2x128xf32> to vector<2x128xf32>
    %c7_217 = arith.constant 7 : index
    %c3_218 = arith.constant 3 : index
    %222 = memref.load %arg3[%c7_217, %c3_218] : memref<8x4xf32, #tpu.memory_space<smem>>
    %223 = vector.broadcast %222 : f32 to vector<2x128xf32>
    %224 = arith.mulf %221, %223 : vector<2x128xf32>
    %225 = arith.addf %219, %224 : vector<2x128xf32>
    %c7_219 = arith.constant 7 : index
    %226 = memref.load %arg4[%c7_219] : memref<8xf32, #tpu.memory_space<smem>>
    %227 = vector.broadcast %226 : f32 to vector<2x128xf32>
    %228 = arith.addf %225, %227 : vector<2x128xf32>
    %c0_220 = arith.constant 0 : index
    %c7_221 = arith.constant 7 : index
    %c0_222 = arith.constant 0 : index
    %c0_223 = arith.constant 0 : index
    %229 = vector.load %arg5[%c0_220, %c7_221, %c0_222, %c0_223] : memref<1x8x2x128xf32, #tpu.memory_space<vmem>>, vector<1x1x2x128xf32>
    %230 = vector.shape_cast %229 : vector<1x1x2x128xf32> to vector<2x128xf32>
    %231 = vector.shape_cast %228 : vector<2x128xf32> to vector<1x1x2x128xf32>
    tpu.vector_store %arg5[%c0_220, %c7_221, %c0_222, %c0_223], %231 {strides = array<i32>} : memref<1x8x2x128xf32, #tpu.memory_space<vmem>>, vector<1x1x2x128xf32>,
    return
  }
  func.func @transform_0(%arg0: i32, %arg1: i32) -> (i32, i32, i32, i32) {
    %c0_i32 = arith.constant 0 : i32
    %c0_i32_0 = arith.constant 0 : i32
    %c0_i32_1 = arith.constant 0 : i32
    return %arg0, %c0_i32, %arg1, %c0_i32_0 : i32, i32, i32, i32
  }
  func.func @transform_1(%arg0: i32, %arg1: i32) -> (i32, i32) {
    %c0_i32 = arith.constant 0 : i32
    %c0_i32_0 = arith.constant 0 : i32
    %c0_i32_1 = arith.constant 0 : i32
    return %c0_i32, %c0_i32_0 : i32, i32
  }
  func.func @transform_2(%arg0: i32, %arg1: i32) -> i32 {
    %c0_i32 = arith.constant 0 : i32
    %c0_i32_0 = arith.constant 0 : i32
    return %c0_i32 : i32
  }
  func.func @transform_3(%arg0: i32, %arg1: i32) -> (i32, i32, i32, i32) {
    %c0_i32 = arith.constant 0 : i32
    %c0_i32_0 = arith.constant 0 : i32
    %c0_i32_1 = arith.constant 0 : i32
    return %arg0, %c0_i32, %arg1, %c0_i32_0 : i32, i32, i32, i32
  }
}

</mosaic_0001>

<llo_original>
// kernel: tpu_custom_call.1
$region0: #{tpu_custom_call.1}
  #allocation0 [shape = 'u32[]', space=smem, size = 0x4, offset = 0x4, fixed_abs, tag = 'smem constant byte address 0x4 - core index']
  #allocation1 [shape = 'u32[72,128]{1,0:T(1,128)}', space=vmem, size = 0x9000, scoped, tag = 'internal scratch']
  %s0 = inlined_call_operand.hbm [shape: f32[2,4,2,128], index: 0, kind: input, shape index: {}]
  %s1 = inlined_call_operand.vmem [shape: f32[8,4], index: 1, kind: input, shape index: {}]
  %s2 = inlined_call_operand.vmem [shape: f32[8], index: 2, kind: input, shape index: {}]
  %s3 = inlined_call_operand.hbm [shape: f32[2,8,2,128], index: 3, kind: output, shape index: {}]
  %s4 = sld [smem:[#allocation0]]
  $region57: #{tpu_custom_call.1} parent=0
    _
  %s6 = ssub.s32 1, %s4
  %s7 = scalar_select 0, %s6, %s4
  $region1: #{tpu_custom_call.1} parent=0
    #allocation2 [shape = 'u8[8192]{0}', space=vmem, size = 0x2000, scoped, tag = 'input window, operand 0']
    #allocation3 [shape = 's32[2]{0}', space=sflag, size = 0x8, scoped, tag = 'scoped memory for tpu_custom_call.1']
    #allocation4 [shape = 's32[2]{0}', space=sflag, size = 0x8, scoped, tag = 'scoped memory for tpu_custom_call.1']
    #allocation5 [shape = 's32[2]{0}', space=sflag, size = 0x8, scoped, tag = 'scoped memory for tpu_custom_call.1']
    #allocation6 [shape = 'u8[4096]{0}', space=smem, size = 0x1000, scoped, tag = 'input window, operand 1, single buffered']
    #allocation7 [shape = 'u8[512]{0}', space=smem, size = 0x200, scoped, tag = 'input window, operand 2, single buffered']
    #allocation8 [shape = 's32[1]{0}', space=sflag, size = 0x4, scoped, tag = 'scoped memory for tpu_custom_call.1']
    #allocation9 [shape = 'u8[16384]{0}', space=vmem, size = 0x4000, scoped, tag = 'output window, operand 0']
    %8 = vsyncpa [#allocation3], 0
    %s9 = scalar_lea.sflag [#allocation3], 1
    %10 = vsyncpa %s9, 0
    %11 = vsyncpa [#allocation5], 0
    %12 = vsyncpa [#allocation8], 0
    %13 = vsyncpa [#allocation4], 0
    %s14 = scalar_lea.sflag [#allocation4], 1
    %15 = vsyncpa %s14, 0
    loop: start=0, step=1, limit=4
    $region2: #{tpu_custom_call.1} parent=1 // loop_pre_header
      _
    $region3: #{tpu_custom_call.1} parent=1 // loop_header
      %s17 = sphi 0, %s21
      %p18 = scmp.ge.s32.totalorder %s17, 4
      %s24 = sphi 0, %s36
      %s25 = sphi 0, %s32
      %s26 = sphi 0, %s24
      %s27 = sphi 0, %s25
      %s28 = sphi 0, %s26
      %s29 = sphi 0, %s27
      %s41 = sphi 0, %s43
      %s44 = sphi 0, %s41
      %s45 = sphi 0, %s44
      %s61 = sphi 0, %s45
      %s65 = sphi 0, %s65
      %s67 = sphi 0, %s65
      %s68 = sphi 0, %s67
      %s82 = sphi 0, %s68
      %s86 = sphi 0, %s86
      %s88 = sphi 0, %s86
      %s89 = sphi 0, %s88
      %s103 = sphi 0, %s89
      %s111 = sphi 0, %s113
      %s114 = sphi 0, %s111
      %s115 = sphi 0, %s114
      %s131 = sphi 0, %s115
    $region4: #{tpu_custom_call.1} parent=1 // loop_header_branch
      %20 = sbr.rel (%p18) target = $region8
    $region5: #{tpu_custom_call.1} parent=1 // loop_body
      %s22 = ssub.s32 %s17, 1
      %s23 = ssub.s32 %s17, 2
      %s30 = sadd.s32 1, %s25
      %p31 = scmp.ge.s32.totalorder %s30, 1
      %s32 = scalar_select %p31, 0, %s30
      %s33 = sadd.s32 1, %s24
      %s34 = scalar_select %p31, %s33, %s24
      %p35 = scmp.ge.s32.totalorder %s34, 2
      %s36 = scalar_select %p35, 0, %s34
      %s37 = ssub.s32 %s24, %s36
      %s38 = ssub.s32 %s25, %s32
      %s39 = sor.u32 %s37, %s38
      %p40 = scmp.eq.s32.totalorder %s39, 0
      %s42 = sadd.s32 %s41, 1
      %s43 = scalar_select %p40, %s41, %s42
      %p46 = pneg %p40
      %p47 = scmp.eq.s32.totalorder %s17, 1
      %p48 = por %p46, %p47
      %p49 = scmp.ne.s32.totalorder %s41, %s44
      %p50 = scmp.eq.s32.totalorder %s17, 0
      %p51 = por %p49, %p50
      %p52 = scmp.ne.s32.totalorder %s41, %s44
      %p53 = scmp.eq.s32.totalorder %s22, 1
      %p54 = por %p52, %p53
      %p55 = scmp.ne.s32.totalorder %s44, %s45
      %p56 = scmp.eq.s32.totalorder %s22, 0
      %p57 = por %p55, %p56
      %p58 = scmp.ne.s32.totalorder %s44, %s45
      %p59 = scmp.eq.s32.totalorder %s23, 1
      %p60 = por %p58, %p59
      %p62 = scmp.ne.s32.totalorder %s45, %s61
      %p63 = scmp.eq.s32.totalorder %s23, 0
      %p64 = por %p62, %p63
      %s66 = sadd.s32 %s65, 1
      %p69 = scmp.eq.s32.totalorder %s17, 1
      %p70 = scmp.ne.s32.totalorder %s65, %s67
      %p71 = scmp.eq.s32.totalorder %s17, 0
      %p72 = por %p70, %p71
      %p73 = scmp.ne.s32.totalorder %s65, %s67
      %p74 = scmp.eq.s32.totalorder %s22, 1
      %p75 = por %p73, %p74
      %p76 = scmp.ne.s32.totalorder %s67, %s68
      %p77 = scmp.eq.s32.totalorder %s22, 0
      %p78 = por %p76, %p77
      %p79 = scmp.ne.s32.totalorder %s67, %s68
      %p80 = scmp.eq.s32.totalorder %s23, 1
      %p81 = por %p79, %p80
      %p83 = scmp.ne.s32.totalorder %s68, %s82
      %p84 = scmp.eq.s32.totalorder %s23, 0
      %p85 = por %p83, %p84
      %s87 = sadd.s32 %s86, 1
      %p90 = scmp.eq.s32.totalorder %s17, 1
      %p91 = scmp.ne.s32.totalorder %s86, %s88
      %p92 = scmp.eq.s32.totalorder %s17, 0
      %p93 = por %p91, %p92
      %p94 = scmp.ne.s32.totalorder %s86, %s88
      %p95 = scmp.eq.s32.totalorder %s22, 1
      %p96 = por %p94, %p95
      %p97 = scmp.ne.s32.totalorder %s88, %s89
      %p98 = scmp.eq.s32.totalorder %s22, 0
      %p99 = por %p97, %p98
      %p100 = scmp.ne.s32.totalorder %s88, %s89
      %p101 = scmp.eq.s32.totalorder %s23, 1
      %p102 = por %p100, %p101
      %p104 = scmp.ne.s32.totalorder %s89, %s103
      %p105 = scmp.eq.s32.totalorder %s23, 0
      %p106 = por %p104, %p105
      %s107 = ssub.s32 %s24, %s36
      %s108 = ssub.s32 %s25, %s32
      %s109 = sor.u32 %s107, %s108
      %p110 = scmp.eq.s32.totalorder %s109, 0
      %s112 = sadd.s32 %s111, 1
      %s113 = scalar_select %p110, %s111, %s112
      %p116 = pneg %p110
      %p117 = scmp.eq.s32.totalorder %s17, 1
      %p118 = por %p116, %p117
      %p119 = scmp.ne.s32.totalorder %s111, %s114
      %p120 = scmp.eq.s32.totalorder %s17, 0
      %p121 = por %p119, %p120
      %p122 = scmp.ne.s32.totalorder %s111, %s114
      %p123 = scmp.eq.s32.totalorder %s22, 1
      %p124 = por %p122, %p123
      %p125 = scmp.ne.s32.totalorder %s114, %s115
      %p126 = scmp.eq.s32.totalorder %s22, 0
      %p127 = por %p125, %p126
      %p128 = scmp.ne.s32.totalorder %s114, %s115
      %p129 = scmp.eq.s32.totalorder %s23, 1
      %p130 = por %p128, %p129
      %p132 = scmp.ne.s32.totalorder %s115, %s131
      %p133 = scmp.eq.s32.totalorder %s23, 0
      %p134 = por %p132, %p133
      %p135 = scmp.le.s32.totalorder 1, %s17
      %p136 = scmp.lt.s32.totalorder %s17, 3
      %p137 = pnand %p135, %p136
      %p138 = pneg %p137
      // Predicated region
      $region9: #{tpu_custom_call.1} parent=5 // pred_check
        _
      $region10: #{tpu_custom_call.1} parent=5 // pred_check_branch
        %140 = sbr.rel (%p137) target = $region12
      $region11: #{tpu_custom_call.1} parent=5 // pred_region
        %s141 = ssub.s32 %s17, 1
        // Predicated region
        $region13: #{tpu_custom_call.1} parent=11 // pred_check
          %p142 = pneg %p78
        $region14: #{tpu_custom_call.1} parent=11 // pred_check_branch
          %144 = sbr.rel (%p142) target = $region16
        $region15: #{tpu_custom_call.1} parent=11 // pred_region
          %146 = vsyncadd [#allocation5], 0
          %s148 = sshll.u32 %s1, 4
          %s149 = int_to_ptr.vmem [resolvable:$true] %s148
          %151 = dma.vmem_to_smem %s149, 128, [#allocation6], [#allocation5]
        $region16: #{tpu_custom_call.1} parent=11 // pred_fallthru
          _
        // Predicated region
        $region17: #{tpu_custom_call.1} parent=11 // pred_check
          %p152 = pneg %p99
        $region18: #{tpu_custom_call.1} parent=11 // pred_check_branch
          %154 = sbr.rel (%p152) target = $region20
        $region19: #{tpu_custom_call.1} parent=11 // pred_region
          %156 = vsyncadd [#allocation8], 0
          %s158 = sshll.u32 %s2, 4
          %s159 = int_to_ptr.vmem [resolvable:$true] %s158
          %161 = dma.vmem_to_smem %s159, 16, [#allocation7], [#allocation8]
        $region20: #{tpu_custom_call.1} parent=11 // pred_fallthru
          _
      $region12: #{tpu_custom_call.1} parent=5 // pred_fallthru
        _
      %p162 = scmp.lt.s32.totalorder %s17, 2
      // Predicated region
      $region21: #{tpu_custom_call.1} parent=5 // pred_check
        %p163 = pneg %p162
      $region22: #{tpu_custom_call.1} parent=5 // pred_check_branch
        %165 = sbr.rel (%p163) target = $region24
      $region23: #{tpu_custom_call.1} parent=5 // pred_region
        // Predicated region
        $region25: #{tpu_custom_call.1} parent=23 // pred_check
          %p166 = pneg %p51
        $region26: #{tpu_custom_call.1} parent=23 // pred_check_branch
          %168 = sbr.rel (%p166) target = $region28
        $region27: #{tpu_custom_call.1} parent=23 // pred_region
          %s169 = sand.u32 %s41, 1
          %s170 = scalar_lea.sflag [#allocation3], %s169
          %s171 = sand.u32 %s41, 1
          %s172 = smul.addr %s171, 8
          %s173 = scalar_lea.vmem [#allocation2], %s172
          %175 = vsyncadd %s170, 0
          %s176 = smul.addr %s24, 4
          %s177 = sadd.s32 %s25, %s176
          %s178 = smul.addr %s177, 2
          %s179 = scalar_lea.hbm %s0, %s178
          %s180 = sshll.u32 %s179, 4
          %s181 = int_to_ptr.hbm [resolvable:$true] %s180
          %s182 = sshll.u32 %s173, 4
          %s183 = int_to_ptr.vmem [resolvable:$true] %s182
          %188 = dma.hbm_to_vmem [thread:$0]  %s181, 128, %s183, %s170, 32, 32, 2
        $region28: #{tpu_custom_call.1} parent=23 // pred_fallthru
          _
      $region24: #{tpu_custom_call.1} parent=5 // pred_fallthru
        _
      %p189 = scmp.le.s32.totalorder 1, %s17
      %p190 = scmp.lt.s32.totalorder %s17, 3
      %p191 = pnand %p189, %p190
      %p192 = pneg %p191
      // Predicated region
      $region29: #{tpu_custom_call.1} parent=5 // pred_check
        _
      $region30: #{tpu_custom_call.1} parent=5 // pred_check_branch
        %194 = sbr.rel (%p191) target = $region32
      $region31: #{tpu_custom_call.1} parent=5 // pred_region
        %s195 = ssub.s32 %s17, 1
        %s196 = sand.u32 %s44, 1
        %s197 = scalar_lea.sflag [#allocation3], %s196
        %s198 = sand.u32 %s44, 1
        %s199 = smul.addr %s198, 8
        %s200 = scalar_lea.vmem [#allocation2], %s199
        // Predicated region
        $region33: #{tpu_custom_call.1} parent=31 // pred_check
          %p201 = pneg %p57
        $region34: #{tpu_custom_call.1} parent=31 // pred_check_branch
          %203 = sbr.rel (%p201) target = $region36
        $region35: #{tpu_custom_call.1} parent=31 // pred_region
          %205 = dma.done %s197, 128
        $region36: #{tpu_custom_call.1} parent=31 // pred_fallthru
          _
        // Predicated region
        $region37: #{tpu_custom_call.1} parent=31 // pred_check
          %p206 = pneg %p78
        $region38: #{tpu_custom_call.1} parent=31 // pred_check_branch
          %208 = sbr.rel (%p206) target = $region40
        $region39: #{tpu_custom_call.1} parent=31 // pred_region
          %210 = dma.done [#allocation5], 128
        $region40: #{tpu_custom_call.1} parent=31 // pred_fallthru
          _
        // Predicated region
        $region41: #{tpu_custom_call.1} parent=31 // pred_check
          %p211 = pneg %p99
        $region42: #{tpu_custom_call.1} parent=31 // pred_check_branch
          %213 = sbr.rel (%p211) target = $region44
        $region43: #{tpu_custom_call.1} parent=31 // pred_region
          %215 = dma.done [#allocation8], 16
        $region44: #{tpu_custom_call.1} parent=31 // pred_fallthru
          _
        %216 = sfence
        %s217 = sand.u32 %s44, 1
        %s218 = scalar_lea.sflag [#allocation3], %s217
        %s219 = sand.u32 %s44, 1
        %s220 = smul.addr %s219, 8
        %s221 = scalar_lea.vmem [#allocation2], %s220
        %p222 = pneg %p57
        %p223 = pneg %p54
        %p224 = pneg %p78
        %p225 = pneg %p75
        %p226 = pneg %p99
        %p227 = pneg %p96
        %p228 = pneg %p127
        %p229 = pneg %p124
        %s230 = sand.u32 %s114, 1
        %s231 = scalar_lea.sflag [#allocation4], %s230
        %s232 = sand.u32 %s114, 1
        %s233 = smul.addr %s232, 16
        %s234 = scalar_lea.vmem [#allocation9], %s233
        %v235 = vld [vmem:[%s200] sm:$0x3]
        %s236 = sld [smem:[#allocation6]]
        %v237 = vstv %s236
        %v238 = vmul.f32 %v235, %v237
        %s239 = scalar_lea.vmem %s200, 2 [#allocation2]
        %v240 = vld [vmem:[%s239] sm:$0x3]
        %s241 = sld [smem:[#allocation6 + $0x1]]
        %v242 = vstv %s241
        %v243 = vmul.f32 %v240, %v242
        %v244 = vadd.f32 %v238, %v243
        %s245 = scalar_lea.vmem %s200, 4 [#allocation2]
        %v246 = vld [vmem:[%s245] sm:$0x3]
        %s247 = sld [smem:[#allocation6 + $0x2]]
        %v248 = vstv %s247
        %v249 = vmul.f32 %v246, %v248
        %v250 = vadd.f32 %v244, %v249
        %s251 = scalar_lea.vmem %s200, 6 [#allocation2]
        %v252 = vld [vmem:[%s251] sm:$0x3]
        %s253 = sld [smem:[#allocation6 + $0x3]]
        %v254 = vstv %s253
        %v255 = vmul.f32 %v252, %v254
        %v256 = vadd.f32 %v250, %v255
        %s257 = sld [smem:[#allocation7]]
        %v258 = vstv %s257
        %v259 = vadd.f32 %v256, %v258
        %260 = vst [vmem:[%s234] sm:$0x3] %v259
        %v261 = vld [vmem:[%s200] sm:$0x3]
        %s262 = sld [smem:[#allocation6 + $0x80]]
        %v263 = vstv %s262
        %v264 = vmul.f32 %v261, %v263
        %v265 = vld [vmem:[%s239] sm:$0x3]
        %s266 = sld [smem:[#allocation6 + $0x81]]
        %v267 = vstv %s266
        %v268 = vmul.f32 %v265, %v267
        %v269 = vadd.f32 %v264, %v268
        %v270 = vld [vmem:[%s245] sm:$0x3]
        %s271 = sld [smem:[#allocation6 + $0x82]]
        %v272 = vstv %s271
        %v273 = vmul.f32 %v270, %v272
        %v274 = vadd.f32 %v269, %v273
        %v275 = vld [vmem:[%s251] sm:$0x3]
        %s276 = sld [smem:[#allocation6 + $0x83]]
        %v277 = vstv %s276
        %v278 = vmul.f32 %v275, %v277
        %v279 = vadd.f32 %v274, %v278
        %s280 = sld [smem:[#allocation7 + $0x1]]
        %v281 = vstv %s280
        %v282 = vadd.f32 %v279, %v281
        %s283 = scalar_lea.vmem %s234, 2 [#allocation9]
        %284 = vst [vmem:[%s283] sm:$0x3] %v282
        %v285 = vld [vmem:[%s200] sm:$0x3]
        %s286 = sld [smem:[#allocation6 + $0x100]]
        %v287 = vstv %s286
        %v288 = vmul.f32 %v285, %v287
        %v289 = vld [vmem:[%s239] sm:$0x3]
        %s290 = sld [smem:[#allocation6 + $0x101]]
        %v291 = vstv %s290
        %v292 = vmul.f32 %v289, %v291
        %v293 = vadd.f32 %v288, %v292
        %v294 = vld [vmem:[%s245] sm:$0x3]
        %s295 = sld [smem:[#allocation6 + $0x102]]
        %v296 = vstv %s295
        %v297 = vmul.f32 %v294, %v296
        %v298 = vadd.f32 %v293, %v297
        %v299 = vld [vmem:[%s251] sm:$0x3]
        %s300 = sld [smem:[#allocation6 + $0x103]]
        %v301 = vstv %s300
        %v302 = vmul.f32 %v299, %v301
        %v303 = vadd.f32 %v298, %v302
        %s304 = sld [smem:[#allocation7 + $0x2]]
        %v305 = vstv %s304
        %v306 = vadd.f32 %v303, %v305
        %s307 = scalar_lea.vmem %s234, 4 [#allocation9]
        %308 = vst [vmem:[%s307] sm:$0x3] %v306
        %v309 = vld [vmem:[%s200] sm:$0x3]
        %s310 = sld [smem:[#allocation6 + $0x180]]
        %v311 = vstv %s310
        %v312 = vmul.f32 %v309, %v311
        %v313 = vld [vmem:[%s239] sm:$0x3]
        %s314 = sld [smem:[#allocation6 + $0x181]]
        %v315 = vstv %s314
        %v316 = vmul.f32 %v313, %v315
        %v317 = vadd.f32 %v312, %v316
        %v318 = vld [vmem:[%s245] sm:$0x3]
        %s319 = sld [smem:[#allocation6 + $0x182]]
        %v320 = vstv %s319
        %v321 = vmul.f32 %v318, %v320
        %v322 = vadd.f32 %v317, %v321
        %v323 = vld [vmem:[%s251] sm:$0x3]
        %s324 = sld [smem:[#allocation6 + $0x183]]
        %v325 = vstv %s324
        %v326 = vmul.f32 %v323, %v325
        %v327 = vadd.f32 %v322, %v326
        %s328 = sld [smem:[#allocation7 + $0x3]]
        %v329 = vstv %s328
        %v330 = vadd.f32 %v327, %v329
        %s331 = scalar_lea.vmem %s234, 6 [#allocation9]
        %332 = vst [vmem:[%s331] sm:$0x3] %v330
        %v333 = vld [vmem:[%s200] sm:$0x3]
        %s334 = sld [smem:[#allocation6 + $0x200]]
        %v335 = vstv %s334
        %v336 = vmul.f32 %v333, %v335
        %v337 = vld [vmem:[%s239] sm:$0x3]
        %s338 = sld [smem:[#allocation6 + $0x201]]
        %v339 = vstv %s338
        %v340 = vmul.f32 %v337, %v339
        %v341 = vadd.f32 %v336, %v340
        %v342 = vld [vmem:[%s245] sm:$0x3]
        %s343 = sld [smem:[#allocation6 + $0x202]]
        %v344 = vstv %s343
        %v345 = vmul.f32 %v342, %v344
        %v346 = vadd.f32 %v341, %v345
        %v347 = vld [vmem:[%s251] sm:$0x3]
        %s348 = sld [smem:[#allocation6 + $0x203]]
        %v349 = vstv %s348
        %v350 = vmul.f32 %v347, %v349
        %v351 = vadd.f32 %v346, %v350
        %s352 = sld [smem:[#allocation7 + $0x4]]
        %v353 = vstv %s352
        %v354 = vadd.f32 %v351, %v353
        %s355 = scalar_lea.vmem %s234, 8 [#allocation9]
        %356 = vst [vmem:[%s355] sm:$0x3] %v354
        %v357 = vld [vmem:[%s200] sm:$0x3]
        %s358 = sld [smem:[#allocation6 + $0x280]]
        %v359 = vstv %s358
        %v360 = vmul.f32 %v357, %v359
        %v361 = vld [vmem:[%s239] sm:$0x3]
        %s362 = sld [smem:[#allocation6 + $0x281]]
        %v363 = vstv %s362
        %v364 = vmul.f32 %v361, %v363
        %v365 = vadd.f32 %v360, %v364
        %v366 = vld [vmem:[%s245] sm:$0x3]
        %s367 = sld [smem:[#allocation6 + $0x282]]
        %v368 = vstv %s367
        %v369 = vmul.f32 %v366, %v368
        %v370 = vadd.f32 %v365, %v369
        %v371 = vld [vmem:[%s251] sm:$0x3]
        %s372 = sld [smem:[#allocation6 + $0x283]]
        %v373 = vstv %s372
        %v374 = vmul.f32 %v371, %v373
        %v375 = vadd.f32 %v370, %v374
        %s376 = sld [smem:[#allocation7 + $0x5]]
        %v377 = vstv %s376
        %v378 = vadd.f32 %v375, %v377
        %s379 = scalar_lea.vmem %s234, 10 [#allocation9]
        %380 = vst [vmem:[%s379] sm:$0x3] %v378
        %v381 = vld [vmem:[%s200] sm:$0x3]
        %s382 = sld [smem:[#allocation6 + $0x300]]
        %v383 = vstv %s382
        %v384 = vmul.f32 %v381, %v383
        %v385 = vld [vmem:[%s239] sm:$0x3]
        %s386 = sld [smem:[#allocation6 + $0x301]]
        %v387 = vstv %s386
        %v388 = vmul.f32 %v385, %v387
        %v389 = vadd.f32 %v384, %v388
        %v390 = vld [vmem:[%s245] sm:$0x3]
        %s391 = sld [smem:[#allocation6 + $0x302]]
        %v392 = vstv %s391
        %v393 = vmul.f32 %v390, %v392
        %v394 = vadd.f32 %v389, %v393
        %v395 = vld [vmem:[%s251] sm:$0x3]
        %s396 = sld [smem:[#allocation6 + $0x303]]
        %v397 = vstv %s396
        %v398 = vmul.f32 %v395, %v397
        %v399 = vadd.f32 %v394, %v398
        %s400 = sld [smem:[#allocation7 + $0x6]]
        %v401 = vstv %s400
        %v402 = vadd.f32 %v399, %v401
        %s403 = scalar_lea.vmem %s234, 12 [#allocation9]
        %404 = vst [vmem:[%s403] sm:$0x3] %v402
        %v405 = vld [vmem:[%s200] sm:$0x3]
        %s406 = sld [smem:[#allocation6 + $0x380]]
        %v407 = vstv %s406
        %v408 = vmul.f32 %v405, %v407
        %v409 = vld [vmem:[%s239] sm:$0x3]
        %s410 = sld [smem:[#allocation6 + $0x381]]
        %v411 = vstv %s410
        %v412 = vmul.f32 %v409, %v411
        %v413 = vadd.f32 %v408, %v412
        %v414 = vld [vmem:[%s245] sm:$0x3]
        %s415 = sld [smem:[#allocation6 + $0x382]]
        %v416 = vstv %s415
        %v417 = vmul.f32 %v414, %v416
        %v418 = vadd.f32 %v413, %v417
        %v419 = vld [vmem:[%s251] sm:$0x3]
        %s420 = sld [smem:[#allocation6 + $0x383]]
        %v421 = vstv %s420
        %v422 = vmul.f32 %v419, %v421
        %v423 = vadd.f32 %v418, %v422
        %s424 = sld [smem:[#allocation7 + $0x7]]
        %v425 = vstv %s424
        %v426 = vadd.f32 %v423, %v425
        %s427 = scalar_lea.vmem %s234, 14 [#allocation9]
        %428 = vst [vmem:[%s427] sm:$0x3] %v426
        %s429 = sand.u32 %s114, 1
        %s430 = scalar_lea.sflag [#allocation4], %s429
        %s431 = sand.u32 %s114, 1
        %s432 = smul.addr %s431, 16
        %s433 = scalar_lea.vmem [#allocation9], %s432
        // Predicated region
        $region45: #{tpu_custom_call.1} parent=31 // pred_check
          %p434 = pneg %p124
        $region46: #{tpu_custom_call.1} parent=31 // pred_check_branch
          %436 = sbr.rel (%p434) target = $region48
        $region47: #{tpu_custom_call.1} parent=31 // pred_region
          %438 = vsyncadd %s430, 0
          %s439 = smul.addr %s26, 8
          %s440 = sadd.s32 %s27, %s439
          %s441 = smul.addr %s440, 2
          %s442 = scalar_lea.hbm %s3, %s441
          %s443 = sshll.u32 %s433, 4
          %s444 = int_to_ptr.vmem [resolvable:$true] %s443
          %s445 = sshll.u32 %s442, 4
          %s446 = int_to_ptr.hbm [resolvable:$true] %s445
          %451 = dma.vmem_to_hbm [thread:$0]  %s444, 256, %s446, %s430, 32, 32, 2
        $region48: #{tpu_custom_call.1} parent=31 // pred_fallthru
          _
      $region32: #{tpu_custom_call.1} parent=5 // pred_fallthru
        _
      %p452 = scmp.le.s32.totalorder 2, %s17
      // Predicated region
      $region49: #{tpu_custom_call.1} parent=5 // pred_check
        %p453 = pneg %p452
      $region50: #{tpu_custom_call.1} parent=5 // pred_check_branch
        %455 = sbr.rel (%p453) target = $region52
      $region51: #{tpu_custom_call.1} parent=5 // pred_region
        %s456 = ssub.s32 %s17, 2
        // Predicated region
        $region53: #{tpu_custom_call.1} parent=51 // pred_check
          %p457 = pneg %p130
        $region54: #{tpu_custom_call.1} parent=51 // pred_check_branch
          %459 = sbr.rel (%p457) target = $region56
        $region55: #{tpu_custom_call.1} parent=51 // pred_region
          %s460 = sand.u32 %s115, 1
          %s461 = scalar_lea.sflag [#allocation4], %s460
          %s462 = sand.u32 %s115, 1
          %s463 = smul.addr %s462, 16
          %s464 = scalar_lea.vmem [#allocation9], %s463
          %466 = dma.done %s461, 256
        $region56: #{tpu_custom_call.1} parent=51 // pred_fallthru
          _
      $region52: #{tpu_custom_call.1} parent=5 // pred_fallthru
        _
    $region6: #{tpu_custom_call.1} parent=1 // loop_footer
      %s21 = sadd.s32 1, %s17
    $region7: #{tpu_custom_call.1} parent=1 // loop_footer_branch
      %16 = sbr.rel target = $region3
    $region8: #{tpu_custom_call.1} parent=1 // loop_exit
      _
    %467 = vsyncpa [#allocation3], 1
    %s468 = scalar_lea.sflag [#allocation3], 1
    %469 = vsyncpa %s468, 1
    %470 = vsyncpa [#allocation4], 1
    %s471 = scalar_lea.sflag [#allocation4], 1
    %472 = vsyncpa %s471, 1
    %473 = vsyncpa [#allocation5], 1
    %s474 = scalar_lea.sflag [#allocation5], 1
    %475 = vsyncpa %s474, 1
    %476 = vsyncpa [#allocation8], 1

</llo_original>
